<compile_context>
chip_gen: v5e
topology: v5e:2x2
jax: 0.10.0
libtpu: 0.0.40
codegen_flags: <defaults>
</compile_context>

<pallas_src>
import functools

import jax
import jax.numpy as jnp
from jax import lax
from jax.experimental import pallas as pl
from jax.experimental.pallas import tpu as pltpu

LANES = 128            # vreg lane width; hidden feature dims are padded to this
BN_EPS = 0.8           # BatchNorm1d(out_feat, 0.8) -> eps = 0.8
LEAK = 0.2
_MAX_TILE_ROWS = 4096  # per-step footprint ~15 MiB at T=4096, safe on all chips
_VMEM_LIMIT = 32 * 1024 * 1024
_FUSE_MAX_TILES = 16   # single fused call unless the batch is very large


def _round_up(x, m):
    return (x + m - 1) // m * m


def _leaky_relu(x, slope=LEAK):
    return jnp.where(x > 0, x, slope * x)


def _hidden2(z_ref, w_ref, vec_ref, in_dim):
    """Shared trunk: Linear1 + LeakyReLU + Linear2 (pre-BN). f32 result."""
    z = z_ref[...].astype(jnp.bfloat16)                            # (T, in_dim)
    h1 = jnp.dot(z, w_ref[0, :in_dim, :],                          # K = in_dim
                 preferred_element_type=jnp.float32)
    h1 = _leaky_relu(h1 + vec_ref[0:1, :])                         # + b1, f32
    # b2 is intentionally omitted: training-mode BatchNorm subtracts the batch
    # mean, which exactly cancels any constant per-feature bias.
    h2 = jnp.dot(h1.astype(jnp.bfloat16), w_ref[1],
                 preferred_element_type=jnp.float32)
    return h2                                                       # (T,128) f32


def _accum_stats(h2, acc_ref, *, t, tile, batch, mask_rows):
    """Accumulate per-feature sum / sumsq of h2 into a VMEM scratch."""
    if mask_rows:  # static: only emitted when the last block overruns the batch
        row = t * tile + lax.broadcasted_iota(jnp.int32, h2.shape, 0)
        h2 = jnp.where(row < batch, h2, 0.0)
    acc_ref[0:1, :] += jnp.sum(h2, axis=0, keepdims=True)           # sum
    acc_ref[1:2, :] += jnp.sum(h2 * h2, axis=0, keepdims=True)      # sumsq


def _finalize_stats(acc_ref, dst_ref, *, batch, eps):
    """Turn (sum, sumsq) rows into (mean, inv_std) rows (may be in place)."""
    # Note: E[x^2]-E[x]^2 in f32; fine for moderate B (see review notes).
    inv_n = 1.0 / batch
    mean = acc_ref[0:1, :] * inv_n
    var = jnp.maximum(acc_ref[1:2, :] * inv_n - mean * mean, 0.0)
    dst_ref[0:1, :] = mean
    dst_ref[1:2, :] = lax.rsqrt(var + eps)


def _head(h2, w_ref, vec_ref, mean, inv_std):
    """BN normalize (precomputed stats) + LeakyReLU + Linear3 + tanh."""
    h2n = (h2 - mean) * inv_std
    h2n = _leaky_relu(h2n * vec_ref[1:2, :] + vec_ref[2:3, :])      # gamma, beta
    h3 = jnp.dot(h2n.astype(jnp.bfloat16), w_ref[2],
                 preferred_element_type=jnp.float32) + vec_ref[3:4, :]   # + b3
    return jnp.tanh(h3)


# ----------------------------- fused single call -----------------------------
def _fused_kernel(z_ref, w_ref, vec_ref, out_ref, stats_ref,
                  *, batch, tile, eps, mask_rows, in_dim):
    """Grid (2, n_tiles): phase 0 = global BN stats, phase 1 = full forward."""
    phase = pl.program_id(0)
    t = pl.program_id(1)

    @pl.when((phase == 0) & (t == 0))
    def _():
        stats_ref[...] = jnp.zeros_like(stats_ref)

    @pl.when(phase == 0)
    def _():
        h2 = _hidden2(z_ref, w_ref, vec_ref, in_dim)
        _accum_stats(h2, stats_ref, t=t, tile=tile, batch=batch,
                     mask_rows=mask_rows)

        @pl.when(t == pl.num_programs(1) - 1)
        def _():
            _finalize_stats(stats_ref, stats_ref, batch=batch, eps=eps)

    @pl.when(phase == 1)
    def _():
        h2 = _hidden2(z_ref, w_ref, vec_ref, in_dim)
        out = _head(h2, w_ref, vec_ref, stats_ref[0:1, :], stats_ref[1:2, :])
        out_ref[...] = out.astype(out_ref.dtype)


# --------------------------- two-call (large batch) ---------------------------
def _stats_kernel(z_ref, w_ref, vec_ref, stats_out_ref, acc_ref,
                  *, batch, tile, eps, mask_rows, in_dim):
    """Pass 1: accumulate sum/sumsq in VMEM scratch, write mean/inv_std once."""
    t = pl.program_id(0)

    @pl.when(t == 0)
    def _():
        acc_ref[...] = jnp.zeros_like(acc_ref)

    h2 = _hidden2(z_ref, w_ref, vec_ref, in_dim)
    _accum_stats(h2, acc_ref, t=t, tile=tile, batch=batch, mask_rows=mask_rows)

    @pl.when(t == pl.num_programs(0) - 1)
    def _():
        _finalize_stats(acc_ref, stats_out_ref, batch=batch, eps=eps)


def _forward_kernel(z_ref, w_ref, vec_ref, stats_ref, out_ref, *, in_dim):
    """Pass 2: trunk + BN (precomputed global stats) + head, bf16 store."""
    h2 = _hidden2(z_ref, w_ref, vec_ref, in_dim)
    out = _head(h2, w_ref, vec_ref, stats_ref[0:1, :], stats_ref[1:2, :])
    out_ref[...] = out.astype(out_ref.dtype)


# ---------------------------------- wrapper ----------------------------------
def pack_params(params):
    """Pack the parameter arrays into two lane-padded VMEM-resident slabs."""
    w1, b1, w2, b2, gamma, beta, w3, b3 = params
    del b2  # cancelled by training-mode BatchNorm's mean subtraction

    def pad_mat(w):
        return jnp.zeros((LANES, LANES), jnp.float32).at[
            : w.shape[0], : w.shape[1]].set(w)

    def pad_vec(v):
        v = jnp.asarray(v).reshape(-1)
        return jnp.zeros((LANES,), jnp.float32).at[: v.shape[0]].set(v)

    # bf16 weight slab (MXU inputs), single resident VMEM block.
    w_slab = jnp.stack([pad_mat(w1), pad_mat(w2), pad_mat(w3)]).astype(jnp.bfloat16)
    # f32 vector slab (post-matmul math stays f32, v5e-safe), 8 sublanes.
    vec_slab = jnp.zeros((8, LANES), jnp.float32)
    vec_slab = vec_slab.at[0].set(pad_vec(b1))
    vec_slab = vec_slab.at[1].set(pad_vec(gamma))
    vec_slab = vec_slab.at[2].set(pad_vec(beta))
    vec_slab = vec_slab.at[3].set(pad_vec(b3))
    return w_slab, vec_slab


def generator_forward(z, params, tile_rows=None, fuse=None):
    """z: (B, latent_dim + conditional_param_count) float32."""
    w1, b1, w2, b2, gamma, beta, w3, b3 = params
    B, in_dim = z.shape
    hidden2 = w3.shape[0]
    latent_dim = w3.shape[1]
    assert in_dim <= LANES and hidden2 <= LANES and latent_dim <= LANES

    # Tile rows: multiple of 8, as big as VMEM comfortably allows.
    if tile_rows is None:
        T = min(_round_up(B, 8), _MAX_TILE_ROWS)
    else:
        T = min(_round_up(tile_rows, 8), _round_up(B, 8))
    B_pad = _round_up(B, T)
    n_tiles = B_pad // T
    mask_rows = B_pad != B   # last block overruns the batch -> mask in kernel

    if fuse is None:
        fuse = n_tiles <= _FUSE_MAX_TILES

    w_slab, vec_slab = pack_params(params)

    trunk_flops = 2 * B * (in_dim * 32 + 32 * 64)
    head_flops = 2 * B * 64 * latent_dim
    param_bytes = int(w_slab.size) * 2 + int(vec_slab.size) * 4
    z_bytes = B * in_dim * 4
    out_bytes = B * LANES * 2

    cp = pltpu.CompilerParams  # alias for brevity

    if fuse:
        out_slab = pl.pallas_call(
            functools.partial(_fused_kernel, batch=B, tile=T, eps=BN_EPS,
                              mask_rows=mask_rows, in_dim=in_dim),
            out_shape=jax.ShapeDtypeStruct((B, LANES), jnp.bfloat16),
            grid=(2, n_tiles),
            in_specs=[
                pl.BlockSpec((T, in_dim), lambda p, t: (t, 0)),
                pl.BlockSpec((3, LANES, LANES), lambda p, t: (0, 0, 0)),  # resident
                pl.BlockSpec((8, LANES), lambda p, t: (0, 0)),            # resident
            ],
            # Phase 0 parks the (unwritten) output buffer on block 0; phase 1
            # writes every block before it is flushed -> single write per block.
            out_specs=pl.BlockSpec((T, LANES), lambda p, t: (t * p, 0)),
            scratch_shapes=[pltpu.VMEM((8, LANES), jnp.float32)],
            compiler_params=cp(dimension_semantics=("arbitrary", "arbitrary"),
                               vmem_limit_bytes=_VMEM_LIMIT),
            cost_estimate=pl.CostEstimate(
                flops=2 * trunk_flops + head_flops,
                transcendentals=B * LANES,
                bytes_accessed=2 * z_bytes + param_bytes + out_bytes),
        )(z, w_slab, vec_slab)
    else:
        # ---- pass 1: global BatchNorm statistics (sequential accumulation) ----
        stats = pl.pallas_call(
            functools.partial(_stats_kernel, batch=B, tile=T, eps=BN_EPS,
                              mask_rows=mask_rows, in_dim=in_dim),
            out_shape=jax.ShapeDtypeStruct((8, LANES), jnp.float32),
            grid=(n_tiles,),
            in_specs=[
                pl.BlockSpec((T, in_dim), lambda t: (t, 0)),
                pl.BlockSpec((3, LANES, LANES), lambda t: (0, 0, 0)),
                pl.BlockSpec((8, LANES), lambda t: (0, 0)),
            ],
            out_specs=pl.BlockSpec((8, LANES), lambda t: (0, 0)),
            scratch_shapes=[pltpu.VMEM((8, LANES), jnp.float32)],
            compiler_params=cp(dimension_semantics=("arbitrary",),
                               vmem_limit_bytes=_VMEM_LIMIT),
            cost_estimate=pl.CostEstimate(
                flops=trunk_flops, transcendentals=0,
                bytes_accessed=z_bytes + param_bytes + 8 * LANES * 4),
        )(z, w_slab, vec_slab)

        # ---- pass 2: full forward with precomputed stats (batch-parallel) ----
        out_slab = pl.pallas_call(
            functools.partial(_forward_kernel, in_dim=in_dim),
            out_shape=jax.ShapeDtypeStruct((B, LANES), jnp.bfloat16),
            grid=(n_tiles,),
            in_specs=[
                pl.BlockSpec((T, in_dim), lambda t: (t, 0)),
                pl.BlockSpec((3, LANES, LANES), lambda t: (0, 0, 0)),
                pl.BlockSpec((8, LANES), lambda t: (0, 0)),
                pl.BlockSpec((8, LANES), lambda t: (0, 0)),
            ],
            out_specs=pl.BlockSpec((T, LANES), lambda t: (t, 0)),
            compiler_params=cp(dimension_semantics=("parallel",),
                               vmem_limit_bytes=_VMEM_LIMIT),
            cost_estimate=pl.CostEstimate(
                flops=trunk_flops + head_flops,
                transcendentals=B * LANES,
                bytes_accessed=z_bytes + param_bytes + out_bytes),
        )(z, w_slab, vec_slab, stats)

    # Slice valid rows / lanes and upcast (tiny (B, latent_dim) array).
    return out_slab[:B, :latent_dim].astype(jnp.float32)


def generator_reference(z, params):
    """Pure-JAX f32 reference (matches the PyTorch module in training mode)."""
    w1, b1, w2, b2, gamma, beta, w3, b3 = params
    h1 = z @ w1 + b1
    h1 = jnp.where(h1 > 0, h1, LEAK * h1)
    h2 = h1 @ w2 + b2
    mean = jnp.mean(h2, axis=0, keepdims=True)
    var = jnp.mean((h2 - mean) ** 2, axis=0, keepdims=True)
    h2n = (h2 - mean) * lax.rsqrt(var + BN_EPS) * gamma + beta
    h2n = jnp.where(h2n > 0, h2n, LEAK * h2n)
    return jnp.tanh(h2n @ w3 + b3)


def init_params(key, latent_dim, conditional_param_count):
    """Deterministic synthetic parameters (shapes match the PyTorch module)."""
    in_dim = latent_dim + conditional_param_count
    k1, k2, k3, k4, k5, k6 = jax.random.split(key, 6)

    def linear(kw, kb, fan_in, fan_out):
        bound = 1.0 / jnp.sqrt(fan_in)
        w = jax.random.uniform(kw, (fan_in, fan_out), jnp.float32, -bound, bound)
        b = jax.random.uniform(kb, (1, fan_out), jnp.float32, -bound, bound)
        return w, b

    w1, b1 = linear(k1, k2, in_dim, 32)
    w2, b2 = linear(k3, k4, 32, 64)
    gamma = jnp.ones((1, 64), jnp.float32)
    beta = jnp.zeros((1, 64), jnp.float32)
    w3, b3 = linear(k5, k6, 64, latent_dim)
    return (w1, b1, w2, b2, gamma, beta, w3, b3)


if __name__ == "__main__":
    latent_dim = 16
    conditional_param_count = 8

    key = jax.random.PRNGKey(0)
    k_params, k_z1, k_z2 = jax.random.split(key, 3)
    params = init_params(k_params, latent_dim, conditional_param_count)
    in_dim = latent_dim + conditional_param_count

    # Case 1: small batch, single tile, fused path, no row mask.
    z1 = jax.random.normal(k_z1, (8, in_dim), jnp.float32)
    out1 = jax.block_until_ready(generator_forward(z1, params))
    ref1 = generator_reference(z1, params)

    # Case 2: fused path, batch not a multiple of the tile -> multi-tile BN
    # accumulation plus masking of the padded rows of the last (uneven) block.
    z2 = jax.random.normal(k_z2, (20, in_dim), jnp.float32)
    out2 = jax.block_until_ready(generator_forward(z2, params, tile_rows=8))
    ref2 = generator_reference(z2, params)

    # Case 3: same inputs through the two-call (large-batch) path.
    out3 = jax.block_until_ready(
        generator_forward(z2, params, tile_rows=8, fuse=False))

    for out, ref, z in ((out1, ref1, z1), (out2, ref2, z2), (out3, ref2, z2)):
        assert out.shape == (z.shape[0], latent_dim)
        assert out.dtype == jnp.float32
        assert bool(jnp.all(jnp.isfinite(out)))
        assert bool(jnp.all(jnp.abs(out) <= 1.0))          # tanh range
        max_err = float(jnp.max(jnp.abs(out - ref)))       # bf16 matmuls + store
        assert max_err < 0.08, f"max abs err {max_err}"

    print("KERNEL_OK")
</pallas_src>

<mosaic_0001>
module attributes {stable_mosaic.version = 11 : i64} {
  func.func @_fused_kernel(%arg0: i32, %arg1: i32, %arg2: memref<8x24xf32, #tpu.memory_space<vmem>>, %arg3: memref<3x128x128xbf16, #tpu.memory_space<vmem>>, %arg4: memref<8x128xf32, #tpu.memory_space<vmem>>, %arg5: memref<8x128xbf16, #tpu.memory_space<vmem>>, %arg6: memref<8x128xf32, #tpu.memory_space<vmem>>) attributes {dimension_semantics = [#tpu.dimension_semantics<arbitrary>, #tpu.dimension_semantics<arbitrary>], iteration_bounds = array<i64: 2, 1>, scalar_prefetch = 0 : i64, scratch_operands = 1 : i64, tpu.core_type = #tpu.core_type<tc>, window_params = [{transform_indices = @transform_0, window_bounds = array<i64: 8, 24>}, {pipeline_mode = #tpu.pipeline_mode<synchronous>, transform_indices = @transform_1, window_bounds = array<i64: 3, 128, 128>}, {pipeline_mode = #tpu.pipeline_mode<synchronous>, transform_indices = @transform_2, window_bounds = array<i64: 8, 128>}, {transform_indices = @transform_3, window_bounds = array<i64: 8, 128>}]} {
    %c0_i32 = arith.constant 0 : i32
    %0 = arith.cmpi eq, %arg0, %c0_i32 : i32
    %c0_i32_0 = arith.constant 0 : i32
    %1 = arith.cmpi eq, %arg1, %c0_i32_0 : i32
    %2 = arith.andi %0, %1 : i1
    %3 = arith.extui %2 : i1 to i32
    %c0_i32_1 = arith.constant 0 : i32
    %4 = arith.cmpi ne, %3, %c0_i32_1 : i32
    scf.if %4 {
      %cst = arith.constant 0.000000e+00 : f32
      %11 = vector.broadcast %cst : f32 to vector<8x128xf32>
      %c0 = arith.constant 0 : index
      %c0_5 = arith.constant 0 : index
      %12 = vector.load %arg6[%c0, %c0_5] : memref<8x128xf32, #tpu.memory_space<vmem>>, vector<8x128xf32>
      tpu.vector_store %arg6[%c0, %c0_5], %11 {strides = array<i32>} : memref<8x128xf32, #tpu.memory_space<vmem>>, vector<8x128xf32>,
    } else {
    }
    %c0_i32_2 = arith.constant 0 : i32
    %5 = arith.cmpi eq, %arg0, %c0_i32_2 : i32
    %6 = arith.extui %5 : i1 to i32
    %c0_i32_3 = arith.constant 0 : i32
    %7 = arith.cmpi ne, %6, %c0_i32_3 : i32
    scf.if %7 {
      %c0 = arith.constant 0 : index
      %c0_5 = arith.constant 0 : index
      %11 = vector.load %arg2[%c0, %c0_5] : memref<8x24xf32, #tpu.memory_space<vmem>>, vector<8x24xf32>
      %12 = arith.truncf %11 : vector<8x24xf32> to vector<8x24xbf16>
      %c0_6 = arith.constant 0 : index
      %c0_7 = arith.constant 0 : index
      %c0_8 = arith.constant 0 : index
      %13 = vector.load %arg3[%c0_6, %c0_7, %c0_8] : memref<3x128x128xbf16, #tpu.memory_space<vmem>>, vector<1x24x128xbf16>
      %14 = vector.shape_cast %13 : vector<1x24x128xbf16> to vector<24x128xbf16>
      %cst = arith.constant dense<0.000000e+00> : vector<8x128xf32>
      %15 = tpu.matmul %12, %14, %cst {dimension_numbers = #tpu.dot_dimension_numbers<[1], [0], [0], [1], [0, 0, 1, 1], [], []>} : vector<8x24xbf16>, vector<24x128xbf16>, vector<8x128xf32> -> vector<8x128xf32>
      %c0_9 = arith.constant 0 : index
      %c0_10 = arith.constant 0 : index
      %16 = vector.load %arg4[%c0_9, %c0_10] : memref<8x128xf32, #tpu.memory_space<vmem>>, vector<1x128xf32>
      %17 = vector.broadcast %16 : vector<1x128xf32> to vector<8x128xf32>
      %18 = arith.addf %15, %17 : vector<8x128xf32>
      %cst_11 = arith.constant 0.000000e+00 : f32
      %19 = vector.broadcast %cst_11 : f32 to vector<8x128xf32>
      %20 = arith.cmpf ogt, %18, %19 : vector<8x128xf32>
      %cst_12 = arith.constant 2.000000e-01 : f32
      %21 = vector.broadcast %cst_12 : f32 to vector<8x128xf32>
      %22 = arith.mulf %21, %18 : vector<8x128xf32>
      %23 = arith.select %20, %18, %22 : vector<8x128xi1>, vector<8x128xf32>
      %24 = arith.truncf %23 : vector<8x128xf32> to vector<8x128xbf16>
      %c1 = arith.constant 1 : index
      %c0_13 = arith.constant 0 : index
      %c0_14 = arith.constant 0 : index
      %25 = vector.load %arg3[%c1, %c0_13, %c0_14] : memref<3x128x128xbf16, #tpu.memory_space<vmem>>, vector<1x128x128xbf16>
      %26 = vector.shape_cast %25 : vector<1x128x128xbf16> to vector<128x128xbf16>
      %cst_15 = arith.constant dense<0.000000e+00> : vector<8x128xf32>
      %27 = tpu.matmul %24, %26, %cst_15 {dimension_numbers = #tpu.dot_dimension_numbers<[1], [0], [0], [1], [0, 0, 1, 1], [], []>} : vector<8x128xbf16>, vector<128x128xbf16>, vector<8x128xf32> -> vector<8x128xf32>
      %c0_16 = arith.constant 0 : index
      %c0_17 = arith.constant 0 : index
      %28 = vector.load %arg6[%c0_16, %c0_17] : memref<8x128xf32, #tpu.memory_space<vmem>>, vector<1x128xf32>
      %cst_18 = arith.constant dense<0.000000e+00> : vector<128xf32>
      %29 = vector.multi_reduction <add>, %27, %cst_18 [0] : vector<8x128xf32> to vector<128xf32>
      %30 = vector.shape_cast %29 : vector<128xf32> to vector<1x128xf32>
      %31 = arith.addf %28, %30 : vector<1x128xf32>
      %c0_19 = arith.constant 0 : index
      %c0_20 = arith.constant 0 : index
      %32 = vector.load %arg6[%c0_19, %c0_20] : memref<8x128xf32, #tpu.memory_space<vmem>>, vector<1x128xf32>
      tpu.vector_store %arg6[%c0_19, %c0_20], %31 {strides = array<i32>} : memref<8x128xf32, #tpu.memory_space<vmem>>, vector<1x128xf32>,
      %c1_21 = arith.constant 1 : index
      %c0_22 = arith.constant 0 : index
      %33 = vector.load %arg6[%c1_21, %c0_22] : memref<8x128xf32, #tpu.memory_space<vmem>>, vector<1x128xf32>
      %34 = arith.mulf %27, %27 : vector<8x128xf32>
      %cst_23 = arith.constant dense<0.000000e+00> : vector<128xf32>
      %35 = vector.multi_reduction <add>, %34, %cst_23 [0] : vector<8x128xf32> to vector<128xf32>
      %36 = vector.shape_cast %35 : vector<128xf32> to vector<1x128xf32>
      %37 = arith.addf %33, %36 : vector<1x128xf32>
      %c1_24 = arith.constant 1 : index
      %c0_25 = arith.constant 0 : index
      %38 = vector.load %arg6[%c1_24, %c0_25] : memref<8x128xf32, #tpu.memory_space<vmem>>, vector<1x128xf32>
      tpu.vector_store %arg6[%c1_24, %c0_25], %37 {strides = array<i32>} : memref<8x128xf32, #tpu.memory_space<vmem>>, vector<1x128xf32>,
      %c0_i32_26 = arith.constant 0 : i32
      %39 = arith.cmpi eq, %arg1, %c0_i32_26 : i32
      %40 = arith.extui %39 : i1 to i32
      %c0_i32_27 = arith.constant 0 : i32
      %41 = arith.cmpi ne, %40, %c0_i32_27 : i32
      scf.if %41 {
        %c0_28 = arith.constant 0 : index
        %c0_29 = arith.constant 0 : index
        %42 = vector.load %arg6[%c0_28, %c0_29] : memref<8x128xf32, #tpu.memory_space<vmem>>, vector<1x128xf32>
        %cst_30 = arith.constant 1.250000e-01 : f32
        %43 = vector.broadcast %cst_30 : f32 to vector<1x128xf32>
        %44 = arith.mulf %42, %43 : vector<1x128xf32>
        %c1_31 = arith.constant 1 : index
        %c0_32 = arith.constant 0 : index
        %45 = vector.load %arg6[%c1_31, %c0_32] : memref<8x128xf32, #tpu.memory_space<vmem>>, vector<1x128xf32>
        %cst_33 = arith.constant 1.250000e-01 : f32
        %46 = vector.broadcast %cst_33 : f32 to vector<1x128xf32>
        %47 = arith.mulf %45, %46 : vector<1x128xf32>
        %48 = arith.mulf %44, %44 : vector<1x128xf32>
        %49 = arith.subf %47, %48 : vector<1x128xf32>
        %cst_34 = arith.constant 0.000000e+00 : f32
        %50 = vector.broadcast %cst_34 : f32 to vector<1x128xf32>
        %51 = arith.maximumf %49, %50 : vector<1x128xf32>
        %c0_35 = arith.constant 0 : index
        %c0_36 = arith.constant 0 : index
        %52 = vector.load %arg6[%c0_35, %c0_36] : memref<8x128xf32, #tpu.memory_space<vmem>>, vector<1x128xf32>
        tpu.vector_store %arg6[%c0_35, %c0_36], %44 {strides = array<i32>} : memref<8x128xf32, #tpu.memory_space<vmem>>, vector<1x128xf32>,
        %cst_37 = arith.constant 8.000000e-01 : f32
        %53 = vector.broadcast %cst_37 : f32 to vector<1x128xf32>
        %54 = arith.addf %51, %53 : vector<1x128xf32>
        %55 = math.rsqrt %54 : vector<1x128xf32>
        %c1_38 = arith.constant 1 : index
        %c0_39 = arith.constant 0 : index
        %56 = vector.load %arg6[%c1_38, %c0_39] : memref<8x128xf32, #tpu.memory_space<vmem>>, vector<1x128xf32>
        tpu.vector_store %arg6[%c1_38, %c0_39], %55 {strides = array<i32>} : memref<8x128xf32, #tpu.memory_space<vmem>>, vector<1x128xf32>,
      } else {
      }
    } else {
    }
    %c1_i32 = arith.constant 1 : i32
    %8 = arith.cmpi eq, %arg0, %c1_i32 : i32
    %9 = arith.extui %8 : i1 to i32
    %c0_i32_4 = arith.constant 0 : i32
    %10 = arith.cmpi ne, %9, %c0_i32_4 : i32
    scf.if %10 {
      %c0 = arith.constant 0 : index
      %c0_5 = arith.constant 0 : index
      %11 = vector.load %arg2[%c0, %c0_5] : memref<8x24xf32, #tpu.memory_space<vmem>>, vector<8x24xf32>
      %12 = arith.truncf %11 : vector<8x24xf32> to vector<8x24xbf16>
      %c0_6 = arith.constant 0 : index
      %c0_7 = arith.constant 0 : index
      %c0_8 = arith.constant 0 : index
      %13 = vector.load %arg3[%c0_6, %c0_7, %c0_8] : memref<3x128x128xbf16, #tpu.memory_space<vmem>>, vector<1x24x128xbf16>
      %14 = vector.shape_cast %13 : vector<1x24x128xbf16> to vector<24x128xbf16>
      %cst = arith.constant dense<0.000000e+00> : vector<8x128xf32>
      %15 = tpu.matmul %12, %14, %cst {dimension_numbers = #tpu.dot_dimension_numbers<[1], [0], [0], [1], [0, 0, 1, 1], [], []>} : vector<8x24xbf16>, vector<24x128xbf16>, vector<8x128xf32> -> vector<8x128xf32>
      %c0_9 = arith.constant 0 : index
      %c0_10 = arith.constant 0 : index
      %16 = vector.load %arg4[%c0_9, %c0_10] : memref<8x128xf32, #tpu.memory_space<vmem>>, vector<1x128xf32>
      %17 = vector.broadcast %16 : vector<1x128xf32> to vector<8x128xf32>
      %18 = arith.addf %15, %17 : vector<8x128xf32>
      %cst_11 = arith.constant 0.000000e+00 : f32
      %19 = vector.broadcast %cst_11 : f32 to vector<8x128xf32>
      %20 = arith.cmpf ogt, %18, %19 : vector<8x128xf32>
      %cst_12 = arith.constant 2.000000e-01 : f32
      %21 = vector.broadcast %cst_12 : f32 to vector<8x128xf32>
      %22 = arith.mulf %21, %18 : vector<8x128xf32>
      %23 = arith.select %20, %18, %22 : vector<8x128xi1>, vector<8x128xf32>
      %24 = arith.truncf %23 : vector<8x128xf32> to vector<8x128xbf16>
      %c1 = arith.constant 1 : index
      %c0_13 = arith.constant 0 : index
      %c0_14 = arith.constant 0 : index
      %25 = vector.load %arg3[%c1, %c0_13, %c0_14] : memref<3x128x128xbf16, #tpu.memory_space<vmem>>, vector<1x128x128xbf16>
      %26 = vector.shape_cast %25 : vector<1x128x128xbf16> to vector<128x128xbf16>
      %cst_15 = arith.constant dense<0.000000e+00> : vector<8x128xf32>
      %27 = tpu.matmul %24, %26, %cst_15 {dimension_numbers = #tpu.dot_dimension_numbers<[1], [0], [0], [1], [0, 0, 1, 1], [], []>} : vector<8x128xbf16>, vector<128x128xbf16>, vector<8x128xf32> -> vector<8x128xf32>
      %c0_16 = arith.constant 0 : index
      %c0_17 = arith.constant 0 : index
      %28 = vector.load %arg6[%c0_16, %c0_17] : memref<8x128xf32, #tpu.memory_space<vmem>>, vector<1x128xf32>
      %c1_18 = arith.constant 1 : index
      %c0_19 = arith.constant 0 : index
      %29 = vector.load %arg6[%c1_18, %c0_19] : memref<8x128xf32, #tpu.memory_space<vmem>>, vector<1x128xf32>
      %30 = vector.broadcast %28 : vector<1x128xf32> to vector<8x128xf32>
      %31 = arith.subf %27, %30 : vector<8x128xf32>
      %32 = vector.broadcast %29 : vector<1x128xf32> to vector<8x128xf32>
      %33 = arith.mulf %31, %32 : vector<8x128xf32>
      %c1_20 = arith.constant 1 : index
      %c0_21 = arith.constant 0 : index
      %34 = vector.load %arg4[%c1_20, %c0_21] : memref<8x128xf32, #tpu.memory_space<vmem>>, vector<1x128xf32>
      %35 = vector.broadcast %34 : vector<1x128xf32> to vector<8x128xf32>
      %36 = arith.mulf %33, %35 : vector<8x128xf32>
      %c2 = arith.constant 2 : index
      %c0_22 = arith.constant 0 : index
      %37 = vector.load %arg4[%c2, %c0_22] : memref<8x128xf32, #tpu.memory_space<vmem>>, vector<1x128xf32>
      %38 = vector.broadcast %37 : vector<1x128xf32> to vector<8x128xf32>
      %39 = arith.addf %36, %38 : vector<8x128xf32>
      %cst_23 = arith.constant 0.000000e+00 : f32
      %40 = vector.broadcast %cst_23 : f32 to vector<8x128xf32>
      %41 = arith.cmpf ogt, %39, %40 : vector<8x128xf32>
      %cst_24 = arith.constant 2.000000e-01 : f32
      %42 = vector.broadcast %cst_24 : f32 to vector<8x128xf32>
      %43 = arith.mulf %42, %39 : vector<8x128xf32>
      %44 = arith.select %41, %39, %43 : vector<8x128xi1>, vector<8x128xf32>
      %45 = arith.truncf %44 : vector<8x128xf32> to vector<8x128xbf16>
      %c2_25 = arith.constant 2 : index
      %c0_26 = arith.constant 0 : index
      %c0_27 = arith.constant 0 : index
      %46 = vector.load %arg3[%c2_25, %c0_26, %c0_27] : memref<3x128x128xbf16, #tpu.memory_space<vmem>>, vector<1x128x128xbf16>
      %47 = vector.shape_cast %46 : vector<1x128x128xbf16> to vector<128x128xbf16>
      %cst_28 = arith.constant dense<0.000000e+00> : vector<8x128xf32>
      %48 = tpu.matmul %45, %47, %cst_28 {dimension_numbers = #tpu.dot_dimension_numbers<[1], [0], [0], [1], [0, 0, 1, 1], [], []>} : vector<8x128xbf16>, vector<128x128xbf16>, vector<8x128xf32> -> vector<8x128xf32>
      %c3 = arith.constant 3 : index
      %c0_29 = arith.constant 0 : index
      %49 = vector.load %arg4[%c3, %c0_29] : memref<8x128xf32, #tpu.memory_space<vmem>>, vector<1x128xf32>
      %50 = vector.broadcast %49 : vector<1x128xf32> to vector<8x128xf32>
      %51 = arith.addf %48, %50 : vector<8x128xf32>
      %52 = math.tanh %51 : vector<8x128xf32>
      %53 = arith.truncf %52 : vector<8x128xf32> to vector<8x128xbf16>
      %c0_30 = arith.constant 0 : index
      %c0_31 = arith.constant 0 : index
      %54 = vector.load %arg5[%c0_30, %c0_31] : memref<8x128xbf16, #tpu.memory_space<vmem>>, vector<8x128xbf16>
      tpu.vector_store %arg5[%c0_30, %c0_31], %53 {strides = array<i32>} : memref<8x128xbf16, #tpu.memory_space<vmem>>, vector<8x128xbf16>,
    } else {
    }
    return
  }
  func.func @transform_0(%arg0: i32, %arg1: i32) -> (i32, i32) {
    %c0_i32 = arith.constant 0 : i32
    %c0_i32_0 = arith.constant 0 : i32
    return %arg1, %c0_i32 : i32, i32
  }
  func.func @transform_1(%arg0: i32, %arg1: i32) -> (i32, i32, i32) {
    %c0_i32 = arith.constant 0 : i32
    %c0_i32_0 = arith.constant 0 : i32
    %c0_i32_1 = arith.constant 0 : i32
    %c0_i32_2 = arith.constant 0 : i32
    return %c0_i32, %c0_i32_0, %c0_i32_1 : i32, i32, i32
  }
  func.func @transform_2(%arg0: i32, %arg1: i32) -> (i32, i32) {
    %c0_i32 = arith.constant 0 : i32
    %c0_i32_0 = arith.constant 0 : i32
    %c0_i32_1 = arith.constant 0 : i32
    return %c0_i32, %c0_i32_0 : i32, i32
  }
  func.func @transform_3(%arg0: i32, %arg1: i32) -> (i32, i32) {
    %0 = arith.muli %arg1, %arg0 : i32
    %c0_i32 = arith.constant 0 : i32
    %c0_i32_0 = arith.constant 0 : i32
    return %0, %c0_i32 : i32, i32
  }
}

</mosaic_0001>

<llo_original>
// kernel: tpu_custom_call.1
$region0: #{tpu_custom_call.1}
  #allocation0 [shape = 'u32[]', space=smem, size = 0x4, offset = 0x4, fixed_abs, tag = 'smem constant byte address 0x4 - core index']
  #allocation1 [shape = 'u32[72,128]{1,0:T(1,128)}', space=vmem, size = 0x9000, scoped, tag = 'internal scratch']
  #allocation2 [shape = 'f32[8,128]{1,0:T(8,128)}', space=vmem, size = 0x1000, scoped, tag = 'scratch operand']
  %s0 = inlined_call_operand.hbm [shape: f32[8,24], index: 0, kind: input, shape index: {}]
  %s1 = inlined_call_operand.hbm [shape: bf16[3,128,128], index: 1, kind: input, shape index: {}]
  %s2 = inlined_call_operand.hbm [shape: f32[8,128], index: 2, kind: input, shape index: {}]
  %s3 = inlined_call_operand.hbm [shape: bf16[8,128], index: 3, kind: output, shape index: {}]
  %s4 = sld [smem:[#allocation0]]
  $region73: #{tpu_custom_call.1} parent=0
    _
  %s6 = ssub.s32 1, %s4
  %s7 = scalar_select 0, %s6, %s4
  $region1: #{tpu_custom_call.1} parent=0
    #allocation3 [shape = 'u8[4096]{0}', space=vmem, size = 0x1000, scoped, tag = 'input window, operand 0, single buffered']
    #allocation4 [shape = 's32[2]{0}', space=sflag, size = 0x8, scoped, tag = 'scoped memory for tpu_custom_call.1']
    #allocation5 [shape = 's32[2]{0}', space=sflag, size = 0x8, scoped, tag = 'scoped memory for tpu_custom_call.1']
    #allocation6 [shape = 'u8[98304]{0}', space=vmem, size = 0x18000, scoped, tag = 'input window, operand 1, single buffered']
    #allocation7 [shape = 's32[1]{0}', space=sflag, size = 0x4, scoped, tag = 'scoped memory for tpu_custom_call.1']
    #allocation8 [shape = 'u8[4096]{0}', space=vmem, size = 0x1000, scoped, tag = 'input window, operand 2, single buffered']
    #allocation9 [shape = 'u8[4096]{0}', space=vmem, size = 0x1000, scoped, tag = 'output window, operand 0']
    %8 = vsyncpa [#allocation4], 0
    %9 = vsyncpa [#allocation7], 0
    %10 = vsyncpa [#allocation5], 0
    %s11 = scalar_lea.sflag [#allocation5], 1
    %12 = vsyncpa %s11, 0
    loop: start=0, step=1, limit=4
    $region2: #{tpu_custom_call.1} parent=1 // loop_pre_header
      _
    $region3: #{tpu_custom_call.1} parent=1 // loop_header
      %s14 = sphi 0, %s18
      %p15 = scmp.ge.s32.totalorder %s14, 4
      %s21 = sphi 0, %s33
      %s22 = sphi 0, %s29
      %s23 = sphi 0, %s21
      %s24 = sphi 0, %s22
      %s25 = sphi 0, %s23
      %s26 = sphi 0, %s24
      %s36 = sphi 0, %s38
      %s39 = sphi 0, %s36
      %s40 = sphi 0, %s39
      %s56 = sphi 0, %s40
      %s60 = sphi 0, %s60
      %s62 = sphi 0, %s60
      %s63 = sphi 0, %s62
      %s77 = sphi 0, %s63
      %s81 = sphi 0, %s81
      %s83 = sphi 0, %s81
      %s84 = sphi 0, %s83
      %s98 = sphi 0, %s84
      %s106 = sphi 0, %s108
      %s109 = sphi 0, %s106
      %s110 = sphi 0, %s109
      %s126 = sphi 0, %s110
    $region4: #{tpu_custom_call.1} parent=1 // loop_header_branch
      %17 = sbr.rel (%p15) target = $region8
    $region5: #{tpu_custom_call.1} parent=1 // loop_body
      %s19 = ssub.s32 %s14, 1
      %s20 = ssub.s32 %s14, 2
      %s27 = sadd.s32 1, %s22
      %p28 = scmp.ge.s32.totalorder %s27, 1
      %s29 = scalar_select %p28, 0, %s27
      %s30 = sadd.s32 1, %s21
      %s31 = scalar_select %p28, %s30, %s21
      %p32 = scmp.ge.s32.totalorder %s31, 2
      %s33 = scalar_select %p32, 0, %s31
      %s34 = ssub.s32 %s22, %s29
      %p35 = scmp.eq.s32.totalorder %s34, 0
      %s37 = sadd.s32 %s36, 1
      %s38 = scalar_select %p35, %s36, %s37
      %p41 = pneg %p35
      %p42 = scmp.eq.s32.totalorder %s14, 1
      %p43 = por %p41, %p42
      %p44 = scmp.ne.s32.totalorder %s36, %s39
      %p45 = scmp.eq.s32.totalorder %s14, 0
      %p46 = por %p44, %p45
      %p47 = scmp.ne.s32.totalorder %s36, %s39
      %p48 = scmp.eq.s32.totalorder %s19, 1
      %p49 = por %p47, %p48
      %p50 = scmp.ne.s32.totalorder %s39, %s40
      %p51 = scmp.eq.s32.totalorder %s19, 0
      %p52 = por %p50, %p51
      %p53 = scmp.ne.s32.totalorder %s39, %s40
      %p54 = scmp.eq.s32.totalorder %s20, 1
      %p55 = por %p53, %p54
      %p57 = scmp.ne.s32.totalorder %s40, %s56
      %p58 = scmp.eq.s32.totalorder %s20, 0
      %p59 = por %p57, %p58
      %s61 = sadd.s32 %s60, 1
      %p64 = scmp.eq.s32.totalorder %s14, 1
      %p65 = scmp.ne.s32.totalorder %s60, %s62
      %p66 = scmp.eq.s32.totalorder %s14, 0
      %p67 = por %p65, %p66
      %p68 = scmp.ne.s32.totalorder %s60, %s62
      %p69 = scmp.eq.s32.totalorder %s19, 1
      %p70 = por %p68, %p69
      %p71 = scmp.ne.s32.totalorder %s62, %s63
      %p72 = scmp.eq.s32.totalorder %s19, 0
      %p73 = por %p71, %p72
      %p74 = scmp.ne.s32.totalorder %s62, %s63
      %p75 = scmp.eq.s32.totalorder %s20, 1
      %p76 = por %p74, %p75
      %p78 = scmp.ne.s32.totalorder %s63, %s77
      %p79 = scmp.eq.s32.totalorder %s20, 0
      %p80 = por %p78, %p79
      %s82 = sadd.s32 %s81, 1
      %p85 = scmp.eq.s32.totalorder %s14, 1
      %p86 = scmp.ne.s32.totalorder %s81, %s83
      %p87 = scmp.eq.s32.totalorder %s14, 0
      %p88 = por %p86, %p87
      %p89 = scmp.ne.s32.totalorder %s81, %s83
      %p90 = scmp.eq.s32.totalorder %s19, 1
      %p91 = por %p89, %p90
      %p92 = scmp.ne.s32.totalorder %s83, %s84
      %p93 = scmp.eq.s32.totalorder %s19, 0
      %p94 = por %p92, %p93
      %p95 = scmp.ne.s32.totalorder %s83, %s84
      %p96 = scmp.eq.s32.totalorder %s20, 1
      %p97 = por %p95, %p96
      %p99 = scmp.ne.s32.totalorder %s84, %s98
      %p100 = scmp.eq.s32.totalorder %s20, 0
      %p101 = por %p99, %p100
      %s102 = smul.u32 %s22, %s21
      %s103 = smul.u32 %s29, %s33
      %s104 = ssub.s32 %s102, %s103
      %p105 = scmp.eq.s32.totalorder %s104, 0
      %s107 = sadd.s32 %s106, 1
      %s108 = scalar_select %p105, %s106, %s107
      %p111 = pneg %p105
      %p112 = scmp.eq.s32.totalorder %s14, 1
      %p113 = por %p111, %p112
      %p114 = scmp.ne.s32.totalorder %s106, %s109
      %p115 = scmp.eq.s32.totalorder %s14, 0
      %p116 = por %p114, %p115
      %p117 = scmp.ne.s32.totalorder %s106, %s109
      %p118 = scmp.eq.s32.totalorder %s19, 1
      %p119 = por %p117, %p118
      %p120 = scmp.ne.s32.totalorder %s109, %s110
      %p121 = scmp.eq.s32.totalorder %s19, 0
      %p122 = por %p120, %p121
      %p123 = scmp.ne.s32.totalorder %s109, %s110
      %p124 = scmp.eq.s32.totalorder %s20, 1
      %p125 = por %p123, %p124
      %p127 = scmp.ne.s32.totalorder %s110, %s126
      %p128 = scmp.eq.s32.totalorder %s20, 0
      %p129 = por %p127, %p128
      %p130 = scmp.le.s32.totalorder 1, %s14
      %p131 = scmp.lt.s32.totalorder %s14, 3
      %p132 = pnand %p130, %p131
      %p133 = pneg %p132
      // Predicated region
      $region9: #{tpu_custom_call.1} parent=5 // pred_check
        _
      $region10: #{tpu_custom_call.1} parent=5 // pred_check_branch
        %135 = sbr.rel (%p132) target = $region12
      $region11: #{tpu_custom_call.1} parent=5 // pred_region
        %s136 = ssub.s32 %s14, 1
        // Predicated region
        $region13: #{tpu_custom_call.1} parent=11 // pred_check
          %p137 = pneg %p52
        $region14: #{tpu_custom_call.1} parent=11 // pred_check_branch
          %139 = sbr.rel (%p137) target = $region16
        $region15: #{tpu_custom_call.1} parent=11 // pred_region
          %141 = vsyncadd [#allocation4], 0
          %s142 = smul.addr %s24, 8
          %s143 = scalar_lea.hbm %s0, %s142
          %s145 = sshll.u32 %s143, 4
          %s146 = int_to_ptr.hbm [resolvable:$true] %s145
          %s147 = sshll.u32 [#allocation3], 4
          %s148 = int_to_ptr.vmem [resolvable:$true] %s147
          %150 = dma.hbm_to_vmem [thread:$0]  %s146, 128, %s148, [#allocation4]
        $region16: #{tpu_custom_call.1} parent=11 // pred_fallthru
          _
        // Predicated region
        $region17: #{tpu_custom_call.1} parent=11 // pred_check
          %p151 = pneg %p73
        $region18: #{tpu_custom_call.1} parent=11 // pred_check_branch
          %153 = sbr.rel (%p151) target = $region20
        $region19: #{tpu_custom_call.1} parent=11 // pred_region
          %155 = vsyncadd [#allocation7], 0
          %s156 = sshll.u32 %s1, 4
          %s157 = int_to_ptr.hbm [resolvable:$true] %s156
          %s158 = sshll.u32 [#allocation6], 4
          %s159 = int_to_ptr.vmem [resolvable:$true] %s158
          %164 = dma.hbm_to_vmem [thread:$0]  %s157, 3072, %s159, [#allocation7], 64, 64, 4
        $region20: #{tpu_custom_call.1} parent=11 // pred_fallthru
          _
        // Predicated region
        $region21: #{tpu_custom_call.1} parent=11 // pred_check
          %p165 = pneg %p94
        $region22: #{tpu_custom_call.1} parent=11 // pred_check_branch
          %167 = sbr.rel (%p165) target = $region24
        $region23: #{tpu_custom_call.1} parent=11 // pred_region
          %169 = vsyncadd [#allocation7], 0
          %s171 = sshll.u32 %s2, 4
          %s172 = int_to_ptr.hbm [resolvable:$true] %s171
          %s173 = sshll.u32 [#allocation8], 4
          %s174 = int_to_ptr.vmem [resolvable:$true] %s173
          %176 = dma.hbm_to_vmem [thread:$0]  %s172, 128, %s174, [#allocation7]
        $region24: #{tpu_custom_call.1} parent=11 // pred_fallthru
          _
      $region12: #{tpu_custom_call.1} parent=5 // pred_fallthru
        _
      %p177 = scmp.lt.s32.totalorder %s14, 2
      // Predicated region
      $region25: #{tpu_custom_call.1} parent=5 // pred_check
        %p178 = pneg %p177
      $region26: #{tpu_custom_call.1} parent=5 // pred_check_branch
        %180 = sbr.rel (%p178) target = $region28
      $region27: #{tpu_custom_call.1} parent=5 // pred_region
        _
      $region28: #{tpu_custom_call.1} parent=5 // pred_fallthru
        _
      %p181 = scmp.le.s32.totalorder 1, %s14
      %p182 = scmp.lt.s32.totalorder %s14, 3
      %p183 = pnand %p181, %p182
      %p184 = pneg %p183
      // Predicated region
      $region29: #{tpu_custom_call.1} parent=5 // pred_check
        _
      $region30: #{tpu_custom_call.1} parent=5 // pred_check_branch
        %186 = sbr.rel (%p183) target = $region32
      $region31: #{tpu_custom_call.1} parent=5 // pred_region
        %s187 = ssub.s32 %s14, 1
        // Predicated region
        $region33: #{tpu_custom_call.1} parent=31 // pred_check
          %p188 = pneg %p52
        $region34: #{tpu_custom_call.1} parent=31 // pred_check_branch
          %190 = sbr.rel (%p188) target = $region36
        $region35: #{tpu_custom_call.1} parent=31 // pred_region
          %192 = dma.done [#allocation4], 128
        $region36: #{tpu_custom_call.1} parent=31 // pred_fallthru
          _
        // Predicated region
        $region37: #{tpu_custom_call.1} parent=31 // pred_check
          %p193 = pneg %p73
        $region38: #{tpu_custom_call.1} parent=31 // pred_check_branch
          %195 = sbr.rel (%p193) target = $region40
        $region39: #{tpu_custom_call.1} parent=31 // pred_region
          %197 = dma.done [#allocation7], 3072
        $region40: #{tpu_custom_call.1} parent=31 // pred_fallthru
          _
        // Predicated region
        $region41: #{tpu_custom_call.1} parent=31 // pred_check
          %p198 = pneg %p94
        $region42: #{tpu_custom_call.1} parent=31 // pred_check_branch
          %200 = sbr.rel (%p198) target = $region44
        $region43: #{tpu_custom_call.1} parent=31 // pred_region
          %202 = dma.done [#allocation7], 128
        $region44: #{tpu_custom_call.1} parent=31 // pred_fallthru
          _
        %p203 = pneg %p52
        %p204 = pneg %p49
        %p205 = pneg %p73
        %p206 = pneg %p70
        %p207 = pneg %p94
        %p208 = pneg %p91
        %p209 = pneg %p122
        %p210 = pneg %p119
        %s211 = sand.u32 %s109, 1
        %s212 = scalar_lea.sflag [#allocation5], %s211
        %s213 = sand.u32 %s109, 1
        %s214 = smul.addr %s213, 4
        %s215 = scalar_lea.vmem [#allocation9], %s214
        %s216 = smul.u32 %s24, %s23
        %p218 = scmp.eq.s32.totalorder %s23, 0
        %p219 = scmp.eq.s32.totalorder %s24, 0
        %p220 = pnand %p218, %p219
        %p221 = pneg %p220
        // Predicated region
        $region45: #{tpu_custom_call.1} parent=31 // pred_check
          _
        $region46: #{tpu_custom_call.1} parent=31 // pred_check_branch
          %223 = sbr.rel (%p220) target = $region48
        $region47: #{tpu_custom_call.1} parent=31 // pred_region
          %224 = vst [vmem:[#allocation2] sm:$0xff] 0.0
        $region48: #{tpu_custom_call.1} parent=31 // pred_fallthru
          _
        // Predicated region
        $region49: #{tpu_custom_call.1} parent=31 // pred_check
          %p225 = pneg %p218
        $region50: #{tpu_custom_call.1} parent=31 // pred_check_branch
          %227 = sbr.rel (%p225) target = $region52
        $region51: #{tpu_custom_call.1} parent=31 // pred_region
          %v228 = vld [vmem:[#allocation3] sm:$0xff]
          %v229 = vpack.c.bf16 %v228, %v228
          %v230 = vld [vmem:[#allocation6] sm:$0xf]
          %v231 = vld [vmem:[#allocation6 + $0x4] sm:$0xf]
          %v232 = vld [vmem:[#allocation6 + $0x8] sm:$0xf]
          %v233 = vld [vmem:[#allocation8] sm:$0x1]
          %v234 = vperm.slane %v233, 0
          %v238 = vunpack.c.l.b16 %v230
          %v239 = vunpack.c.l.b16 %v231
          %v240 = vunpack.c.l.b16 %v232
          %v241 = vpack.c.b16 %v239, %v238
          %v242 = vpack.c.b16 %v240, %v240
          %vm244 = vcmask 195584
          %v246 = vsel %vm244, %v229, 0
          %vm248 = vcmask 1043456
          %v250 = vsel %vm248, %v242, 0
          %252 = vmatpush.bf16.msra.mxu0 0
          %253 = vmatpush.bf16.msra.mxu0 0
          %254 = vmatpush.bf16.msra.mxu0 0
          %255 = vmatpush.bf16.msra.mxu0 0
          %256 = vmatpush.bf16.msra.mxu0 0
          %257 = vmatpush.bf16.msra.mxu0 0
          %258 = vmatpush.bf16.msra.mxu0 %v250
          %259 = vmatpush.bf16.msra.mxu0 %v241
          %260 = vmatmul.bf16.gmra.mxu0 %v246
          %v261 = vpop.f32.mrf.mxu0
          %v262 = vadd.f32 %v234, %v261
          %v263 = vpop.f32.mrf.mxu0
          %264 = vdwg.mxu0
          %vm265 = vcmp.gt.f32.partialorder %v262, 0.0
          %v266 = vmul.f32 %v262, 0.2
          %v267 = vsel %vm265, %v262, %v266
          %v268 = vpack.c.bf16 %v267, %v267
          %s269 = scalar_lea.vmem [#allocation6], 64
          %v270 = vld [vmem:[%s269] sm:$0xf]
          %v271 = vld [vmem:[%s269 + $0x4] sm:$0xf]
          %v272 = vld [vmem:[%s269 + $0x8] sm:$0xf]
          %v273 = vld [vmem:[%s269 + $0xc] sm:$0xf]
          %v274 = vld [vmem:[%s269 + $0x10] sm:$0xf]
          %v275 = vld [vmem:[%s269 + $0x14] sm:$0xf]
          %v276 = vld [vmem:[%s269 + $0x18] sm:$0xf]
          %v277 = vld [vmem:[%s269 + $0x1c] sm:$0xf]
          %v278 = vld [vmem:[%s269 + $0x20] sm:$0xf]
          %v279 = vld [vmem:[%s269 + $0x24] sm:$0xf]
          %v280 = vld [vmem:[%s269 + $0x28] sm:$0xf]
          %v281 = vld [vmem:[%s269 + $0x2c] sm:$0xf]
          %v282 = vld [vmem:[%s269 + $0x30] sm:$0xf]
          %v283 = vld [vmem:[%s269 + $0x34] sm:$0xf]
          %v284 = vld [vmem:[%s269 + $0x38] sm:$0xf]
          %v285 = vld [vmem:[%s269 + $0x3c] sm:$0xf]
          %v302 = vunpack.c.l.b16 %v270
          %v303 = vunpack.c.l.b16 %v271
          %v304 = vunpack.c.l.b16 %v272
          %v305 = vunpack.c.l.b16 %v273
          %v306 = vunpack.c.l.b16 %v274
          %v307 = vunpack.c.l.b16 %v275
          %v308 = vunpack.c.l.b16 %v276
          %v309 = vunpack.c.l.b16 %v277
          %v310 = vunpack.c.l.b16 %v278
          %v311 = vunpack.c.l.b16 %v279
          %v312 = vunpack.c.l.b16 %v280
          %v313 = vunpack.c.l.b16 %v281
          %v314 = vunpack.c.l.b16 %v282
          %v315 = vunpack.c.l.b16 %v283
          %v316 = vunpack.c.l.b16 %v284
          %v317 = vunpack.c.l.b16 %v285
          %v318 = vpack.c.b16 %v303, %v302
          %v319 = vpack.c.b16 %v305, %v304
          %v320 = vpack.c.b16 %v307, %v306
          %v321 = vpack.c.b16 %v309, %v308
          %v322 = vpack.c.b16 %v311, %v310
          %v323 = vpack.c.b16 %v313, %v312
          %v324 = vpack.c.b16 %v315, %v314
          %v325 = vpack.c.b16 %v317, %v316
          %334 = vmatpush.bf16.msra.mxu0 %v325
          %335 = vmatpush.bf16.msra.mxu0 %v324
          %336 = vmatpush.bf16.msra.mxu0 %v323
          %337 = vmatpush.bf16.msra.mxu0 %v322
          %338 = vmatpush.bf16.msra.mxu0 %v321
          %339 = vmatpush.bf16.msra.mxu0 %v320
          %340 = vmatpush.bf16.msra.mxu0 %v319
          %341 = vmatpush.bf16.msra.mxu0 %v318
          %342 = vmatmul.bf16.gmra.mxu0 %v268
          %v343 = vpop.f32.mrf.mxu0
          %v344 = vadd.f32 0.0, %v343
          %v345 = vpop.f32.mrf.mxu0
          %346 = vdwg.mxu0
          %v347 = vld [vmem:[#allocation2] sm:$0x1]
          %v348 = vrot.slane %v344, 4
          %v349 = vadd.f32 %v344, %v348
          %v350 = vrot.slane %v349, 2
          %v351 = vadd.f32 %v349, %v350
          %v352 = vrot.slane %v351, 1
          %v353 = vadd.f32 %v351, %v352
          %v354 = vadd.f32 %v347, %v353
          %355 = vst [vmem:[#allocation2] sm:$0x1] %v354
          %v356 = vld [vmem:[#allocation2 + $0x1] sm:$0x1]
          %v357 = vmul.f32 %v344, %v344
          %v358 = vrot.slane %v357, 4
          %v359 = vadd.f32 %v357, %v358
          %v360 = vrot.slane %v359, 2
          %v361 = vadd.f32 %v359, %v360
          %v362 = vrot.slane %v361, 1
          %v363 = vadd.f32 %v361, %v362
          %v364 = vadd.f32 %v356, %v363
          %365 = vst [vmem:[#allocation2 + $0x1] sm:$0x1] %v364
          // Predicated region
          $region53: #{tpu_custom_call.1} parent=51 // pred_check
            %p366 = pneg %p219
          $region54: #{tpu_custom_call.1} parent=51 // pred_check_branch
            %368 = sbr.rel (%p366) target = $region56
          $region55: #{tpu_custom_call.1} parent=51 // pred_region
            %v369 = vld [vmem:[#allocation2] sm:$0x1]
            %v370 = vmul.f32 %v369, 0.125
            %v371 = vld [vmem:[#allocation2 + $0x1] sm:$0x1]
            %v372 = vmul.f32 %v371, 0.125
            %v373 = vmul.f32 %v370, %v370
            %v374 = vsub.f32 %v372, %v373
            %v375 = vmax.f32 %v374, 0.0
            %376 = vst [vmem:[#allocation2] sm:$0x1] %v370
            %v377 = vadd.f32 %v375, 0.8
            %v378 = vrsqrt.pop %v377
            %v379 = vmul.f32 %v378, %v377
            %v380 = vmul.f32 %v379, %v378
            %v381 = vmul.f32 0.5, %v380
            %v382 = vsub.f32 1.5, %v381
            %v383 = vmul.f32 %v378, %v382
            %vm384 = vweird.f32 %v377
            %vm385 = vweird.f32 %v378
            %vm386 = vmor %vm384, %vm385
            %v387 = vsel %vm386, %v378, %v383
            %388 = vst [vmem:[#allocation2 + $0x1] sm:$0x1] %v387
          $region56: #{tpu_custom_call.1} parent=51 // pred_fallthru
            _
        $region52: #{tpu_custom_call.1} parent=31 // pred_fallthru
          _
        %p389 = scmp.eq.s32.totalorder %s23, 1
        // Predicated region
        $region57: #{tpu_custom_call.1} parent=31 // pred_check
          %p390 = pneg %p389
        $region58: #{tpu_custom_call.1} parent=31 // pred_check_branch
          %392 = sbr.rel (%p390) target = $region60
        $region59: #{tpu_custom_call.1} parent=31 // pred_region
          %v393 = vld [vmem:[#allocation3] sm:$0xff]
          %v394 = vpack.c.bf16 %v393, %v393
          %v395 = vld [vmem:[#allocation6] sm:$0xf]
          %v396 = vld [vmem:[#allocation6 + $0x4] sm:$0xf]
          %v397 = vld [vmem:[#allocation6 + $0x8] sm:$0xf]
          %v398 = vld [vmem:[#allocation8] sm:$0x1]
          %v399 = vperm.slane %v398, 0
          %v403 = vunpack.c.l.b16 %v395
          %v404 = vunpack.c.l.b16 %v396
          %v405 = vunpack.c.l.b16 %v397
          %v406 = vpack.c.b16 %v404, %v403
          %v407 = vpack.c.b16 %v405, %v405
          %vm409 = vcmask 195584
          %v411 = vsel %vm409, %v394, 0
          %vm413 = vcmask 1043456
          %v415 = vsel %vm413, %v407, 0
          %417 = vmatpush.bf16.msra.mxu0 0
          %418 = vmatpush.bf16.msra.mxu0 0
          %419 = vmatpush.bf16.msra.mxu0 0
          %420 = vmatpush.bf16.msra.mxu0 0
          %421 = vmatpush.bf16.msra.mxu0 0
          %422 = vmatpush.bf16.msra.mxu0 0
          %423 = vmatpush.bf16.msra.mxu0 %v415
          %424 = vmatpush.bf16.msra.mxu0 %v406
          %425 = vmatmul.bf16.gmra.mxu0 %v411
          %v426 = vpop.f32.mrf.mxu0
          %v427 = vadd.f32 %v399, %v426
          %v428 = vpop.f32.mrf.mxu0
          %429 = vdwg.mxu0
          %vm430 = vcmp.gt.f32.partialorder %v427, 0.0
          %v431 = vmul.f32 %v427, 0.2
          %v432 = vsel %vm430, %v427, %v431
          %v433 = vpack.c.bf16 %v432, %v432
          %s434 = scalar_lea.vmem [#allocation6], 64
          %v435 = vld [vmem:[%s434] sm:$0xf]
          %v436 = vld [vmem:[%s434 + $0x4] sm:$0xf]
          %v437 = vld [vmem:[%s434 + $0x8] sm:$0xf]
          %v438 = vld [vmem:[%s434 + $0xc] sm:$0xf]
          %v439 = vld [vmem:[%s434 + $0x10] sm:$0xf]
          %v440 = vld [vmem:[%s434 + $0x14] sm:$0xf]
          %v441 = vld [vmem:[%s434 + $0x18] sm:$0xf]
          %v442 = vld [vmem:[%s434 + $0x1c] sm:$0xf]
          %v443 = vld [vmem:[%s434 + $0x20] sm:$0xf]
          %v444 = vld [vmem:[%s434 + $0x24] sm:$0xf]
          %v445 = vld [vmem:[%s434 + $0x28] sm:$0xf]
          %v446 = vld [vmem:[%s434 + $0x2c] sm:$0xf]
          %v447 = vld [vmem:[%s434 + $0x30] sm:$0xf]
          %v448 = vld [vmem:[%s434 + $0x34] sm:$0xf]
          %v449 = vld [vmem:[%s434 + $0x38] sm:$0xf]
          %v450 = vld [vmem:[%s434 + $0x3c] sm:$0xf]
          %v467 = vunpack.c.l.b16 %v435
          %v468 = vunpack.c.l.b16 %v436
          %v469 = vunpack.c.l.b16 %v437
          %v470 = vunpack.c.l.b16 %v438
          %v471 = vunpack.c.l.b16 %v439
          %v472 = vunpack.c.l.b16 %v440
          %v473 = vunpack.c.l.b16 %v441
          %v474 = vunpack.c.l.b16 %v442
          %v475 = vunpack.c.l.b16 %v443
          %v476 = vunpack.c.l.b16 %v444
          %v477 = vunpack.c.l.b16 %v445
          %v478 = vunpack.c.l.b16 %v446
          %v479 = vunpack.c.l.b16 %v447
          %v480 = vunpack.c.l.b16 %v448
          %v481 = vunpack.c.l.b16 %v449
          %v482 = vunpack.c.l.b16 %v450
          %v483 = vpack.c.b16 %v468, %v467
          %v484 = vpack.c.b16 %v470, %v469
          %v485 = vpack.c.b16 %v472, %v471
          %v486 = vpack.c.b16 %v474, %v473
          %v487 = vpack.c.b16 %v476, %v475
          %v488 = vpack.c.b16 %v478, %v477
          %v489 = vpack.c.b16 %v480, %v479
          %v490 = vpack.c.b16 %v482, %v481
          %499 = vmatpush.bf16.msra.mxu0 %v490
          %500 = vmatpush.bf16.msra.mxu0 %v489
          %501 = vmatpush.bf16.msra.mxu0 %v488
          %502 = vmatpush.bf16.msra.mxu0 %v487
          %503 = vmatpush.bf16.msra.mxu0 %v486
          %504 = vmatpush.bf16.msra.mxu0 %v485
          %505 = vmatpush.bf16.msra.mxu0 %v484
          %506 = vmatpush.bf16.msra.mxu0 %v483
          %507 = vmatmul.bf16.gmra.mxu0 %v433
          %v508 = vpop.f32.mrf.mxu0
          %v509 = vadd.f32 0.0, %v508
          %v510 = vpop.f32.mrf.mxu0
          %511 = vdwg.mxu0
          %v512 = vld [vmem:[#allocation2] sm:$0x1]
          %v513 = vld [vmem:[#allocation2 + $0x1] sm:$0x1]
          %v514 = vperm.slane %v512, 0
          %v515 = vsub.f32 %v509, %v514
          %v516 = vperm.slane %v513, 0
          %v517 = vmul.f32 %v515, %v516
          %v518 = vld [vmem:[#allocation8 + $0x1] sm:$0x1]
          %v519 = vperm.slane %v518, 0
          %v520 = vmul.f32 %v517, %v519
          %v521 = vld [vmem:[#allocation8 + $0x2] sm:$0x1]
          %v522 = vperm.slane %v521, 0
          %v523 = vadd.f32 %v520, %v522
          %vm524 = vcmp.gt.f32.partialorder %v523, 0.0
          %v525 = vmul.f32 %v523, 0.2
          %v526 = vsel %vm524, %v523, %v525
          %v527 = vpack.c.bf16 %v526, %v526
          %s528 = scalar_lea.vmem [#allocation6], 128
          %v529 = vld [vmem:[%s528] sm:$0xf]
          %v530 = vld [vmem:[%s528 + $0x4] sm:$0xf]
          %v531 = vld [vmem:[%s528 + $0x8] sm:$0xf]
          %v532 = vld [vmem:[%s528 + $0xc] sm:$0xf]
          %v533 = vld [vmem:[%s528 + $0x10] sm:$0xf]
          %v534 = vld [vmem:[%s528 + $0x14] sm:$0xf]
          %v535 = vld [vmem:[%s528 + $0x18] sm:$0xf]
          %v536 = vld [vmem:[%s528 + $0x1c] sm:$0xf]
          %v537 = vld [vmem:[%s528 + $0x20] sm:$0xf]
          %v538 = vld [vmem:[%s528 + $0x24] sm:$0xf]
          %v539 = vld [vmem:[%s528 + $0x28] sm:$0xf]
          %v540 = vld [vmem:[%s528 + $0x2c] sm:$0xf]
          %v541 = vld [vmem:[%s528 + $0x30] sm:$0xf]
          %v542 = vld [vmem:[%s528 + $0x34] sm:$0xf]
          %v543 = vld [vmem:[%s528 + $0x38] sm:$0xf]
          %v544 = vld [vmem:[%s528 + $0x3c] sm:$0xf]
          %v545 = vld [vmem:[#allocation8 + $0x3] sm:$0x1]
          %v546 = vperm.slane %v545, 0
          %v563 = vunpack.c.l.b16 %v529
          %v564 = vunpack.c.l.b16 %v530
          %v565 = vunpack.c.l.b16 %v531
          %v566 = vunpack.c.l.b16 %v532
          %v567 = vunpack.c.l.b16 %v533
          %v568 = vunpack.c.l.b16 %v534
          %v569 = vunpack.c.l.b16 %v535
          %v570 = vunpack.c.l.b16 %v536
          %v571 = vunpack.c.l.b16 %v537
          %v572 = vunpack.c.l.b16 %v538
          %v573 = vunpack.c.l.b16 %v539
          %v574 = vunpack.c.l.b16 %v540
          %v575 = vunpack.c.l.b16 %v541
          %v576 = vunpack.c.l.b16 %v542
          %v577 = vunpack.c.l.b16 %v543
          %v578 = vunpack.c.l.b16 %v544
          %v579 = vpack.c.b16 %v564, %v563
          %v580 = vpack.c.b16 %v566, %v565
          %v581 = vpack.c.b16 %v568, %v567
          %v582 = vpack.c.b16 %v570, %v569
          %v583 = vpack.c.b16 %v572, %v571
          %v584 = vpack.c.b16 %v574, %v573
          %v585 = vpack.c.b16 %v576, %v575
          %v586 = vpack.c.b16 %v578, %v577
          %595 = vmatpush.bf16.msra.mxu0 %v586
          %596 = vmatpush.bf16.msra.mxu0 %v585
          %597 = vmatpush.bf16.msra.mxu0 %v584
          %598 = vmatpush.bf16.msra.mxu0 %v583
          %599 = vmatpush.bf16.msra.mxu0 %v582
          %600 = vmatpush.bf16.msra.mxu0 %v581
          %601 = vmatpush.bf16.msra.mxu0 %v580
          %602 = vmatpush.bf16.msra.mxu0 %v579
          %603 = vmatmul.bf16.gmra.mxu0 %v527
          %v604 = vpop.f32.mrf.mxu0
          %v605 = vadd.f32 %v546, %v604
          %v606 = vpop.f32.mrf.mxu0
          %607 = vdwg.mxu0
          %v608 = vtanh.pop %v605
          %v609 = vpack.c.bf16 %v608, %v608
          %610 = vst [vmem:[%s215] sm:$0xf] %v609
        $region60: #{tpu_custom_call.1} parent=31 // pred_fallthru
          _
        %s611 = sand.u32 %s109, 1
        %s612 = scalar_lea.sflag [#allocation5], %s611
        %s613 = sand.u32 %s109, 1
        %s614 = smul.addr %s613, 4
        %s615 = scalar_lea.vmem [#allocation9], %s614
        // Predicated region
        $region61: #{tpu_custom_call.1} parent=31 // pred_check
          %p616 = pneg %p119
        $region62: #{tpu_custom_call.1} parent=31 // pred_check_branch
          %618 = sbr.rel (%p616) target = $region64
        $region63: #{tpu_custom_call.1} parent=31 // pred_region
          %s619 = smul.u32 %s24, %s23
          %621 = vsyncadd %s612, 0
          %s622 = smul.addr %s619, 4
          %s623 = scalar_lea.hbm %s3, %s622
          %s625 = sshll.u32 %s615, 4
          %s626 = int_to_ptr.vmem [resolvable:$true] %s625
          %s627 = sshll.u32 %s623, 4
          %s628 = int_to_ptr.hbm [resolvable:$true] %s627
          %630 = dma.vmem_to_hbm [thread:$0]  %s626, 64, %s628, %s612
        $region64: #{tpu_custom_call.1} parent=31 // pred_fallthru
          _
      $region32: #{tpu_custom_call.1} parent=5 // pred_fallthru
        _
      %p631 = scmp.le.s32.totalorder 2, %s14
      // Predicated region
      $region65: #{tpu_custom_call.1} parent=5 // pred_check
        %p632 = pneg %p631
      $region66: #{tpu_custom_call.1} parent=5 // pred_check_branch
        %634 = sbr.rel (%p632) target = $region68
      $region67: #{tpu_custom_call.1} parent=5 // pred_region
        %s635 = ssub.s32 %s14, 2
        // Predicated region
        $region69: #{tpu_custom_call.1} parent=67 // pred_check
          %p636 = pneg %p125
        $region70: #{tpu_custom_call.1} parent=67 // pred_check_branch
          %638 = sbr.rel (%p636) target = $region72
        $region71: #{tpu_custom_call.1} parent=67 // pred_region
          %s639 = sand.u32 %s110, 1
          %s640 = scalar_lea.sflag [#allocation5], %s639
          %s641 = sand.u32 %s110, 1
          %s642 = smul.addr %s641, 4
          %s643 = scalar_lea.vmem [#allocation9], %s642
          %645 = dma.done %s640, 64
        $region72: #{tpu_custom_call.1} parent=67 // pred_fallthru
          _
      $region68: #{tpu_custom_call.1} parent=5 // pred_fallthru
        _
    $region6: #{tpu_custom_call.1} parent=1 // loop_footer
      %s18 = sadd.s32 1, %s14
    $region7: #{tpu_custom_call.1} parent=1 // loop_footer_branch
      %13 = sbr.rel target = $region3
    $region8: #{tpu_custom_call.1} parent=1 // loop_exit
      _
    %646 = vsyncpa [#allocation4], 1
    %s647 = scalar_lea.sflag [#allocation4], 1
    %648 = vsyncpa %s647, 1
    %649 = vsyncpa [#allocation7], 1
    %650 = vsyncpa [#allocation5], 1
    %s651 = scalar_lea.sflag [#allocation5], 1
    %652 = vsyncpa %s651, 1

</llo_original>
